<compile_context>
chip_gen: v6e
topology: v6e:2x2x1
jax: 0.10.0
libtpu: 0.0.40
codegen_flags: <defaults>
</compile_context>

<pallas_src>
import jax
import jax.numpy as jnp
from jax.experimental import pallas as pl
from jax.experimental.pallas import tpu as pltpu


def _make_divisible(v, divisor, min_value=None, round_limit=0.9):
    if min_value is None:
        min_value = divisor
    new_v = max(min_value, int(v + divisor / 2) // divisor * divisor)
    if new_v < round_limit * v:
        new_v += divisor
    return new_v


def _se_kernel(x_ref, w1_ref, b1_ref, w2_ref, b2_ref, o_ref):
    # x_ref: (TB, C, HW) block covering TB batch elements.

    # Squeeze: global average pool over HW, accumulated in f32. The cast is
    # fused into the reduction; no full f32 copy of the tile is kept live.
    y = jnp.mean(x_ref[...].astype(jnp.float32), axis=-1)            # (TB, C)

    # Excitation: Linear(C -> hidden) + SiLU, Linear(hidden -> C) + Sigmoid.
    # With TB rows batched per step the MXU sees >=TB real sublanes of work.
    h = jnp.dot(y, w1_ref[...], preferred_element_type=jnp.float32) + b1_ref[...]
    h = h * jax.nn.sigmoid(h)                                         # SiLU
    s = jnp.dot(h, w2_ref[...], preferred_element_type=jnp.float32) + b2_ref[...]
    s = jax.nn.sigmoid(s)                                             # (TB, C)

    # Scale: re-read x from VMEM and multiply in the native dtype (the scale
    # vector is tiny, so only it gets cast — not the whole tile).
    o_ref[...] = x_ref[...] * s.astype(o_ref.dtype)[:, :, None]


def _choose_tb(B, C, HW, dtype_bytes, vmem_budget_bytes=24 << 20):
    """Largest divisor of B whose double-buffered in+out blocks fit the budget,
    while keeping >=2 grid steps so v7x's two TensorCores both get work."""
    slab = C * HW * dtype_bytes
    # in + out, each double-buffered => ~4 copies of the block resident.
    tb_max = max(1, vmem_budget_bytes // (4 * slab))
    tb_max = min(tb_max, max(1, B // 2))
    tb = 1
    for d in range(1, tb_max + 1):
        if B % d == 0:
            tb = d
    return tb


def se_layer(x_nchw, w1, b1, w2, b2):
    """x_nchw: (B, C, H, W). Returns x * sigmoid(fc2(silu(fc1(avgpool(x)))))."""
    B, C, H, W = x_nchw.shape
    HW = H * W
    hidden = w1.shape[1]
    x = x_nchw.reshape(B, C, HW)
    dtype_bytes = x.dtype.itemsize

    TB = _choose_tb(B, C, HW, dtype_bytes)
    grid = (B // TB,)

    # Purely HBM-bandwidth bound: one read + one write of x plus tiny weights.
    cost = pl.CostEstimate(
        flops=int(B * C * HW + 4 * B * C * hidden),
        transcendentals=int(2 * B * (hidden + C)),
        bytes_accessed=int(2 * B * C * HW * dtype_bytes
                           + (2 * C * hidden + hidden + C) * w1.dtype.itemsize),
    )

    # Above the default scoped limit (16 MiB v5e / 32 MiB v6e,v7x), below
    # v7x's 64 MiB physical VMEM; block sizing above stays well under it.
    vmem_limit = 40 * 1024 * 1024

    out = pl.pallas_call(
        _se_kernel,
        out_shape=jax.ShapeDtypeStruct((B, C, HW), x.dtype),
        grid_spec=pltpu.PrefetchScalarGridSpec(
            num_scalar_prefetch=0,
            grid=grid,
            in_specs=[
                pl.BlockSpec((TB, C, HW), lambda b: (b, 0, 0)),
                pl.BlockSpec((C, hidden), lambda b: (0, 0)),
                pl.BlockSpec((1, hidden), lambda b: (0, 0)),
                pl.BlockSpec((hidden, C), lambda b: (0, 0)),
                pl.BlockSpec((1, C), lambda b: (0, 0)),
            ],
            out_specs=pl.BlockSpec((TB, C, HW), lambda b: (b, 0, 0)),
        ),
        compiler_params=pltpu.CompilerParams(
            dimension_semantics=("parallel",),
            vmem_limit_bytes=vmem_limit,
        ),
        cost_estimate=cost,
        # Each x block is fully read into VMEM before its output block is
        # written back, so aliasing x -> out is safe and lets XLA reuse the
        # HBM buffer when the caller donates x.
        input_output_aliases={0: 0},
    )(x, w1, b1, w2, b2)

    return out.reshape(B, C, H, W)


def se_layer_ref(x_nchw, w1, b1, w2, b2):
    """Pure-JAX reference matching the PyTorch forward."""
    y = jnp.mean(x_nchw, axis=(2, 3))                 # (B, C)
    h = y @ w1 + b1[0]                                # (B, hidden)
    h = h * jax.nn.sigmoid(h)                         # SiLU
    s = jax.nn.sigmoid(h @ w2 + b2[0])                # (B, C)
    return x_nchw * s[:, :, None, None]


if __name__ == "__main__":
    # Module config: SELayer(inp=4, oup=4, reduction=4)
    inp = 4
    oup = 4
    reduction = 4
    hidden = _make_divisible(inp // reduction, 8)     # -> 8

    B, C, H, W = 2, oup, 16, 16

    key = jax.random.PRNGKey(0)
    k_x, k_w1, k_b1, k_w2, k_b2 = jax.random.split(key, 5)

    x = jax.random.normal(k_x, (B, C, H, W), dtype=jnp.float32)

    # Deterministic synthetic parameters (stored pre-transposed: y @ W + b).
    # nn.Linear(oup, hidden): weight (hidden, oup) -> w1 = weight.T (oup, hidden)
    w1 = jax.random.normal(k_w1, (oup, hidden), dtype=jnp.float32) * 0.1
    b1 = jax.random.normal(k_b1, (1, hidden), dtype=jnp.float32) * 0.1
    # nn.Linear(hidden, oup): weight (oup, hidden) -> w2 = weight.T (hidden, oup)
    w2 = jax.random.normal(k_w2, (hidden, oup), dtype=jnp.float32) * 0.1
    b2 = jax.random.normal(k_b2, (1, oup), dtype=jnp.float32) * 0.1

    out = se_layer(x, w1, b1, w2, b2)
    out = jax.block_until_ready(out)

    ref = se_layer_ref(x, w1, b1, w2, b2)
    assert out.shape == (B, C, H, W)
    assert jnp.allclose(out, ref, atol=1e-5, rtol=1e-5), "mismatch vs reference"

    print("KERNEL_OK")
</pallas_src>

<mosaic_0001>
module attributes {stable_mosaic.version = 11 : i64} {
  func.func @_se_kernel(%arg0: i32, %arg1: memref<1x4x256xf32, #tpu.memory_space<vmem>>, %arg2: memref<4x8xf32, #tpu.memory_space<vmem>>, %arg3: memref<1x8xf32, #tpu.memory_space<vmem>>, %arg4: memref<8x4xf32, #tpu.memory_space<vmem>>, %arg5: memref<1x4xf32, #tpu.memory_space<vmem>>, %arg6: memref<1x4x256xf32, #tpu.memory_space<vmem>>) attributes {dimension_semantics = [#tpu.dimension_semantics<parallel>], iteration_bounds = array<i64: 2>, scalar_prefetch = 0 : i64, scratch_operands = 0 : i64, tpu.core_type = #tpu.core_type<tc>, window_params = [{transform_indices = @transform_0, window_bounds = array<i64: 1, 4, 256>}, {pipeline_mode = #tpu.pipeline_mode<synchronous>, transform_indices = @transform_1, window_bounds = array<i64: 4, 8>}, {pipeline_mode = #tpu.pipeline_mode<synchronous>, transform_indices = @transform_2, window_bounds = array<i64: 1, 8>}, {pipeline_mode = #tpu.pipeline_mode<synchronous>, transform_indices = @transform_3, window_bounds = array<i64: 8, 4>}, {pipeline_mode = #tpu.pipeline_mode<synchronous>, transform_indices = @transform_4, window_bounds = array<i64: 1, 4>}, {transform_indices = @transform_5, window_bounds = array<i64: 1, 4, 256>}]} {
    %c0 = arith.constant 0 : index
    %c0_0 = arith.constant 0 : index
    %c0_1 = arith.constant 0 : index
    %0 = vector.load %arg1[%c0, %c0_0, %c0_1] : memref<1x4x256xf32, #tpu.memory_space<vmem>>, vector<1x4x256xf32>
    %cst = arith.constant dense<0.000000e+00> : vector<1x4xf32>
    %1 = vector.multi_reduction <add>, %0, %cst [2] : vector<1x4x256xf32> to vector<1x4xf32>
    %cst_2 = arith.constant 2.560000e+02 : f32
    %2 = vector.broadcast %cst_2 : f32 to vector<1x4xf32>
    %3 = arith.divf %1, %2 : vector<1x4xf32>
    %c0_3 = arith.constant 0 : index
    %c0_4 = arith.constant 0 : index
    %4 = vector.load %arg2[%c0_3, %c0_4] : memref<4x8xf32, #tpu.memory_space<vmem>>, vector<4x8xf32>
    %cst_5 = arith.constant dense<0.000000e+00> : vector<1x8xf32>
    %5 = tpu.matmul %3, %4, %cst_5 {dimension_numbers = #tpu.dot_dimension_numbers<[1], [0], [0], [1], [0, 0, 1, 1], [], []>} : vector<1x4xf32>, vector<4x8xf32>, vector<1x8xf32> -> vector<1x8xf32>
    %c0_6 = arith.constant 0 : index
    %c0_7 = arith.constant 0 : index
    %6 = vector.load %arg3[%c0_6, %c0_7] : memref<1x8xf32, #tpu.memory_space<vmem>>, vector<1x8xf32>
    %7 = arith.addf %5, %6 : vector<1x8xf32>
    %8 = arith.negf %7 : vector<1x8xf32>
    %9 = math.exp %8 : vector<1x8xf32>
    %cst_8 = arith.constant 1.000000e+00 : f32
    %10 = vector.broadcast %cst_8 : f32 to vector<1x8xf32>
    %11 = arith.addf %10, %9 : vector<1x8xf32>
    %12 = arith.divf %10, %11 : vector<1x8xf32>
    %13 = arith.mulf %7, %12 : vector<1x8xf32>
    %c0_9 = arith.constant 0 : index
    %c0_10 = arith.constant 0 : index
    %14 = vector.load %arg4[%c0_9, %c0_10] : memref<8x4xf32, #tpu.memory_space<vmem>>, vector<8x4xf32>
    %cst_11 = arith.constant dense<0.000000e+00> : vector<1x4xf32>
    %15 = tpu.matmul %13, %14, %cst_11 {dimension_numbers = #tpu.dot_dimension_numbers<[1], [0], [0], [1], [0, 0, 1, 1], [], []>} : vector<1x8xf32>, vector<8x4xf32>, vector<1x4xf32> -> vector<1x4xf32>
    %c0_12 = arith.constant 0 : index
    %c0_13 = arith.constant 0 : index
    %16 = vector.load %arg5[%c0_12, %c0_13] : memref<1x4xf32, #tpu.memory_space<vmem>>, vector<1x4xf32>
    %17 = arith.addf %15, %16 : vector<1x4xf32>
    %18 = arith.negf %17 : vector<1x4xf32>
    %19 = math.exp %18 : vector<1x4xf32>
    %cst_14 = arith.constant 1.000000e+00 : f32
    %20 = vector.broadcast %cst_14 : f32 to vector<1x4xf32>
    %21 = arith.addf %20, %19 : vector<1x4xf32>
    %22 = arith.divf %20, %21 : vector<1x4xf32>
    %c0_15 = arith.constant 0 : index
    %c0_16 = arith.constant 0 : index
    %c0_17 = arith.constant 0 : index
    %23 = vector.load %arg1[%c0_15, %c0_16, %c0_17] : memref<1x4x256xf32, #tpu.memory_space<vmem>>, vector<1x4x256xf32>
    %24 = vector.shape_cast %22 : vector<1x4xf32> to vector<1x4x1xf32>
    %25 = vector.broadcast %24 : vector<1x4x1xf32> to vector<1x4x256xf32>
    %26 = arith.mulf %23, %25 : vector<1x4x256xf32>
    %c0_18 = arith.constant 0 : index
    %c0_19 = arith.constant 0 : index
    %c0_20 = arith.constant 0 : index
    %27 = vector.load %arg6[%c0_18, %c0_19, %c0_20] : memref<1x4x256xf32, #tpu.memory_space<vmem>>, vector<1x4x256xf32>
    tpu.vector_store %arg6[%c0_18, %c0_19, %c0_20], %26 {strides = array<i32>} : memref<1x4x256xf32, #tpu.memory_space<vmem>>, vector<1x4x256xf32>,
    return
  }
  func.func @transform_0(%arg0: i32) -> (i32, i32, i32) {
    %c0_i32 = arith.constant 0 : i32
    %c0_i32_0 = arith.constant 0 : i32
    %c0_i32_1 = arith.constant 0 : i32
    return %arg0, %c0_i32, %c0_i32_0 : i32, i32, i32
  }
  func.func @transform_1(%arg0: i32) -> (i32, i32) {
    %c0_i32 = arith.constant 0 : i32
    %c0_i32_0 = arith.constant 0 : i32
    %c0_i32_1 = arith.constant 0 : i32
    return %c0_i32, %c0_i32_0 : i32, i32
  }
  func.func @transform_2(%arg0: i32) -> (i32, i32) {
    %c0_i32 = arith.constant 0 : i32
    %c0_i32_0 = arith.constant 0 : i32
    %c0_i32_1 = arith.constant 0 : i32
    return %c0_i32, %c0_i32_0 : i32, i32
  }
  func.func @transform_3(%arg0: i32) -> (i32, i32) {
    %c0_i32 = arith.constant 0 : i32
    %c0_i32_0 = arith.constant 0 : i32
    %c0_i32_1 = arith.constant 0 : i32
    return %c0_i32, %c0_i32_0 : i32, i32
  }
  func.func @transform_4(%arg0: i32) -> (i32, i32) {
    %c0_i32 = arith.constant 0 : i32
    %c0_i32_0 = arith.constant 0 : i32
    %c0_i32_1 = arith.constant 0 : i32
    return %c0_i32, %c0_i32_0 : i32, i32
  }
  func.func @transform_5(%arg0: i32) -> (i32, i32, i32) {
    %c0_i32 = arith.constant 0 : i32
    %c0_i32_0 = arith.constant 0 : i32
    %c0_i32_1 = arith.constant 0 : i32
    return %arg0, %c0_i32, %c0_i32_0 : i32, i32, i32
  }
}

</mosaic_0001>

<llo_original>
// kernel: tpu_custom_call.1
$region0: #{tpu_custom_call.1}
  #allocation0 [shape = 'u32[]', space=smem, size = 0x4, offset = 0x4, fixed_abs, tag = 'smem constant byte address 0x4 - core index']
  #allocation1 [shape = 'u32[144,128]{1,0:T(1,128)}', space=vmem, size = 0x12000, scoped, tag = 'internal scratch']
  %s0 = inlined_call_operand.hbm [shape: f32[2,4,256], index: 0, kind: input, shape index: {}, may-alias: {0,5}]
  %s1 = inlined_call_operand.vmem [shape: f32[4,8], index: 1, kind: input, shape index: {}]
  %s2 = inlined_call_operand.vmem [shape: f32[1,8], index: 2, kind: input, shape index: {}]
  %s3 = inlined_call_operand.vmem [shape: f32[8,4], index: 3, kind: input, shape index: {}]
  %s4 = inlined_call_operand.vmem [shape: f32[1,4], index: 4, kind: input, shape index: {}]
  %s5 = inlined_call_operand.hbm [shape: f32[2,4,256], index: 5, kind: output, shape index: {}, may-alias: {0,5}]
  %s6 = sld [smem:[#allocation0]]
  $region57: #{tpu_custom_call.1} parent=0
    _
  %s8 = ssub.s32 1, %s6
  %s9 = scalar_select 0, %s8, %s6
  $region1: #{tpu_custom_call.1} parent=0
    #allocation2 [shape = 'u8[8192]{0}', space=vmem, size = 0x2000, scoped, tag = 'input window, operand 0']
    #allocation3 [shape = 's32[2]{0}', space=sflag, size = 0x8, scoped, tag = 'scoped memory for tpu_custom_call.1']
    #allocation4 [shape = 's32[2]{0}', space=sflag, size = 0x8, scoped, tag = 'scoped memory for tpu_custom_call.1']
    #allocation5 [shape = 'u8[8192]{0}', space=vmem, size = 0x2000, scoped, tag = 'output window, operand 0']
    %10 = vsyncpa [#allocation3], 0
    %s11 = scalar_lea.sflag [#allocation3], 1
    %12 = vsyncpa %s11, 0
    %13 = vsyncpa [#allocation4], 0
    %s14 = scalar_lea.sflag [#allocation4], 1
    %15 = vsyncpa %s14, 0
    loop: start=0, step=1, limit=4
    $region2: #{tpu_custom_call.1} parent=1 // loop_pre_header
      _
    $region3: #{tpu_custom_call.1} parent=1 // loop_header
      %s17 = sphi 0, %s21
      %p18 = scmp.ge.s32.totalorder %s17, 4
      %s27 = sphi 0, %s29
      %s30 = sphi 0, %s27
      %s31 = sphi 0, %s30
      %s47 = sphi 0, %s31
      %s51 = sphi 0, %s51
      %s53 = sphi 0, %s51
      %s54 = sphi 0, %s53
      %s68 = sphi 0, %s54
      %s72 = sphi 0, %s72
      %s74 = sphi 0, %s72
      %s75 = sphi 0, %s74
      %s89 = sphi 0, %s75
      %s93 = sphi 0, %s93
      %s95 = sphi 0, %s93
      %s96 = sphi 0, %s95
      %s110 = sphi 0, %s96
      %s114 = sphi 0, %s114
      %s116 = sphi 0, %s114
      %s117 = sphi 0, %s116
      %s131 = sphi 0, %s117
      %s137 = sphi 0, %s139
      %s140 = sphi 0, %s137
      %s141 = sphi 0, %s140
      %s157 = sphi 0, %s141
    $region4: #{tpu_custom_call.1} parent=1 // loop_header_branch
      %20 = sbr.rel (%p18) target = $region8
    $region5: #{tpu_custom_call.1} parent=1 // loop_body
      %s22 = ssub.s32 %s17, 1
      %s23 = ssub.s32 %s17, 2
      %s24 = sadd.s32 %s17, 1
      %s25 = ssub.s32 %s17, %s24
      %p26 = scmp.eq.s32.totalorder %s25, 0
      %s28 = sadd.s32 %s27, 1
      %s29 = scalar_select %p26, %s27, %s28
      %p32 = pneg %p26
      %p33 = scmp.eq.s32.totalorder %s17, 1
      %p34 = por %p32, %p33
      %p35 = scmp.ne.s32.totalorder %s27, %s30
      %p36 = scmp.eq.s32.totalorder %s17, 0
      %p37 = por %p35, %p36
      %p38 = scmp.ne.s32.totalorder %s27, %s30
      %p39 = scmp.eq.s32.totalorder %s22, 1
      %p40 = por %p38, %p39
      %p41 = scmp.ne.s32.totalorder %s30, %s31
      %p42 = scmp.eq.s32.totalorder %s22, 0
      %p43 = por %p41, %p42
      %p44 = scmp.ne.s32.totalorder %s30, %s31
      %p45 = scmp.eq.s32.totalorder %s23, 1
      %p46 = por %p44, %p45
      %p48 = scmp.ne.s32.totalorder %s31, %s47
      %p49 = scmp.eq.s32.totalorder %s23, 0
      %p50 = por %p48, %p49
      %s52 = sadd.s32 %s51, 1
      %p55 = scmp.eq.s32.totalorder %s17, 1
      %p56 = scmp.ne.s32.totalorder %s51, %s53
      %p57 = scmp.eq.s32.totalorder %s17, 0
      %p58 = por %p56, %p57
      %p59 = scmp.ne.s32.totalorder %s51, %s53
      %p60 = scmp.eq.s32.totalorder %s22, 1
      %p61 = por %p59, %p60
      %p62 = scmp.ne.s32.totalorder %s53, %s54
      %p63 = scmp.eq.s32.totalorder %s22, 0
      %p64 = por %p62, %p63
      %p65 = scmp.ne.s32.totalorder %s53, %s54
      %p66 = scmp.eq.s32.totalorder %s23, 1
      %p67 = por %p65, %p66
      %p69 = scmp.ne.s32.totalorder %s54, %s68
      %p70 = scmp.eq.s32.totalorder %s23, 0
      %p71 = por %p69, %p70
      %s73 = sadd.s32 %s72, 1
      %p76 = scmp.eq.s32.totalorder %s17, 1
      %p77 = scmp.ne.s32.totalorder %s72, %s74
      %p78 = scmp.eq.s32.totalorder %s17, 0
      %p79 = por %p77, %p78
      %p80 = scmp.ne.s32.totalorder %s72, %s74
      %p81 = scmp.eq.s32.totalorder %s22, 1
      %p82 = por %p80, %p81
      %p83 = scmp.ne.s32.totalorder %s74, %s75
      %p84 = scmp.eq.s32.totalorder %s22, 0
      %p85 = por %p83, %p84
      %p86 = scmp.ne.s32.totalorder %s74, %s75
      %p87 = scmp.eq.s32.totalorder %s23, 1
      %p88 = por %p86, %p87
      %p90 = scmp.ne.s32.totalorder %s75, %s89
      %p91 = scmp.eq.s32.totalorder %s23, 0
      %p92 = por %p90, %p91
      %s94 = sadd.s32 %s93, 1
      %p97 = scmp.eq.s32.totalorder %s17, 1
      %p98 = scmp.ne.s32.totalorder %s93, %s95
      %p99 = scmp.eq.s32.totalorder %s17, 0
      %p100 = por %p98, %p99
      %p101 = scmp.ne.s32.totalorder %s93, %s95
      %p102 = scmp.eq.s32.totalorder %s22, 1
      %p103 = por %p101, %p102
      %p104 = scmp.ne.s32.totalorder %s95, %s96
      %p105 = scmp.eq.s32.totalorder %s22, 0
      %p106 = por %p104, %p105
      %p107 = scmp.ne.s32.totalorder %s95, %s96
      %p108 = scmp.eq.s32.totalorder %s23, 1
      %p109 = por %p107, %p108
      %p111 = scmp.ne.s32.totalorder %s96, %s110
      %p112 = scmp.eq.s32.totalorder %s23, 0
      %p113 = por %p111, %p112
      %s115 = sadd.s32 %s114, 1
      %p118 = scmp.eq.s32.totalorder %s17, 1
      %p119 = scmp.ne.s32.totalorder %s114, %s116
      %p120 = scmp.eq.s32.totalorder %s17, 0
      %p121 = por %p119, %p120
      %p122 = scmp.ne.s32.totalorder %s114, %s116
      %p123 = scmp.eq.s32.totalorder %s22, 1
      %p124 = por %p122, %p123
      %p125 = scmp.ne.s32.totalorder %s116, %s117
      %p126 = scmp.eq.s32.totalorder %s22, 0
      %p127 = por %p125, %p126
      %p128 = scmp.ne.s32.totalorder %s116, %s117
      %p129 = scmp.eq.s32.totalorder %s23, 1
      %p130 = por %p128, %p129
      %p132 = scmp.ne.s32.totalorder %s117, %s131
      %p133 = scmp.eq.s32.totalorder %s23, 0
      %p134 = por %p132, %p133
      %s135 = ssub.s32 %s17, %s24
      %p136 = scmp.eq.s32.totalorder %s135, 0
      %s138 = sadd.s32 %s137, 1
      %s139 = scalar_select %p136, %s137, %s138
      %p142 = pneg %p136
      %p143 = scmp.eq.s32.totalorder %s17, 1
      %p144 = por %p142, %p143
      %p145 = scmp.ne.s32.totalorder %s137, %s140
      %p146 = scmp.eq.s32.totalorder %s17, 0
      %p147 = por %p145, %p146
      %p148 = scmp.ne.s32.totalorder %s137, %s140
      %p149 = scmp.eq.s32.totalorder %s22, 1
      %p150 = por %p148, %p149
      %p151 = scmp.ne.s32.totalorder %s140, %s141
      %p152 = scmp.eq.s32.totalorder %s22, 0
      %p153 = por %p151, %p152
      %p154 = scmp.ne.s32.totalorder %s140, %s141
      %p155 = scmp.eq.s32.totalorder %s23, 1
      %p156 = por %p154, %p155
      %p158 = scmp.ne.s32.totalorder %s141, %s157
      %p159 = scmp.eq.s32.totalorder %s23, 0
      %p160 = por %p158, %p159
      %p161 = scmp.le.s32.totalorder 1, %s17
      %p162 = scmp.lt.s32.totalorder %s17, 3
      %p163 = pnand %p161, %p162
      %p164 = pneg %p163
      // Predicated region
      $region9: #{tpu_custom_call.1} parent=5 // pred_check
        _
      $region10: #{tpu_custom_call.1} parent=5 // pred_check_branch
        %166 = sbr.rel (%p163) target = $region12
      $region11: #{tpu_custom_call.1} parent=5 // pred_region
        %s167 = ssub.s32 %s17, 1
        // Predicated region
        $region13: #{tpu_custom_call.1} parent=11 // pred_check
          %p168 = pneg %p64
        $region14: #{tpu_custom_call.1} parent=11 // pred_check_branch
          %170 = sbr.rel (%p168) target = $region16
        $region15: #{tpu_custom_call.1} parent=11 // pred_region
          _
        $region16: #{tpu_custom_call.1} parent=11 // pred_fallthru
          _
        // Predicated region
        $region17: #{tpu_custom_call.1} parent=11 // pred_check
          %p171 = pneg %p85
        $region18: #{tpu_custom_call.1} parent=11 // pred_check_branch
          %173 = sbr.rel (%p171) target = $region20
        $region19: #{tpu_custom_call.1} parent=11 // pred_region
          _
        $region20: #{tpu_custom_call.1} parent=11 // pred_fallthru
          _
        // Predicated region
        $region21: #{tpu_custom_call.1} parent=11 // pred_check
          %p174 = pneg %p106
        $region22: #{tpu_custom_call.1} parent=11 // pred_check_branch
          %176 = sbr.rel (%p174) target = $region24
        $region23: #{tpu_custom_call.1} parent=11 // pred_region
          _
        $region24: #{tpu_custom_call.1} parent=11 // pred_fallthru
          _
        // Predicated region
        $region25: #{tpu_custom_call.1} parent=11 // pred_check
          %p177 = pneg %p127
        $region26: #{tpu_custom_call.1} parent=11 // pred_check_branch
          %179 = sbr.rel (%p177) target = $region28
        $region27: #{tpu_custom_call.1} parent=11 // pred_region
          _
        $region28: #{tpu_custom_call.1} parent=11 // pred_fallthru
          _
      $region12: #{tpu_custom_call.1} parent=5 // pred_fallthru
        _
      %p180 = scmp.lt.s32.totalorder %s17, 2
      // Predicated region
      $region29: #{tpu_custom_call.1} parent=5 // pred_check
        %p181 = pneg %p180
      $region30: #{tpu_custom_call.1} parent=5 // pred_check_branch
        %183 = sbr.rel (%p181) target = $region32
      $region31: #{tpu_custom_call.1} parent=5 // pred_region
        // Predicated region
        $region33: #{tpu_custom_call.1} parent=31 // pred_check
          %p184 = pneg %p37
        $region34: #{tpu_custom_call.1} parent=31 // pred_check_branch
          %186 = sbr.rel (%p184) target = $region36
        $region35: #{tpu_custom_call.1} parent=31 // pred_region
          %s187 = sand.u32 %s27, 1
          %s188 = scalar_lea.sflag [#allocation3], %s187
          %s189 = sand.u32 %s27, 1
          %s190 = smul.addr %s189, 8
          %s191 = scalar_lea.vmem [#allocation2], %s190
          %s193 = ssub.s32 128, 128
          %194 = vsyncadd %s188, %s193
          %s195 = smul.addr %s17, 2
          %s196 = smul.addr %s195, 64
          %s197 = scalar_lea.hbm %s0, %s196
          %s199 = sshll.u32 %s191, 4
          %s200 = int_to_ptr.vmem [resolvable:$true] %s199
          %202 = dma.hbm_to_vmem [thread:$0]  %s197, 128, %s200, %s188
        $region36: #{tpu_custom_call.1} parent=31 // pred_fallthru
          _
      $region32: #{tpu_custom_call.1} parent=5 // pred_fallthru
        _
      %p203 = scmp.le.s32.totalorder 1, %s17
      %p204 = scmp.lt.s32.totalorder %s17, 3
      %p205 = pnand %p203, %p204
      %p206 = pneg %p205
      // Predicated region
      $region37: #{tpu_custom_call.1} parent=5 // pred_check
        _
      $region38: #{tpu_custom_call.1} parent=5 // pred_check_branch
        %208 = sbr.rel (%p205) target = $region40
      $region39: #{tpu_custom_call.1} parent=5 // pred_region
        %s209 = ssub.s32 %s17, 1
        %s210 = sand.u32 %s30, 1
        %s211 = scalar_lea.sflag [#allocation3], %s210
        %s212 = sand.u32 %s30, 1
        %s213 = smul.addr %s212, 8
        %s214 = scalar_lea.vmem [#allocation2], %s213
        // Predicated region
        $region41: #{tpu_custom_call.1} parent=39 // pred_check
          %p215 = pneg %p43
        $region42: #{tpu_custom_call.1} parent=39 // pred_check_branch
          %217 = sbr.rel (%p215) target = $region44
        $region43: #{tpu_custom_call.1} parent=39 // pred_region
          %218 = dma.done %s211, 128
        $region44: #{tpu_custom_call.1} parent=39 // pred_fallthru
          _
        %s219 = sand.u32 %s30, 1
        %s220 = scalar_lea.sflag [#allocation3], %s219
        %s221 = sand.u32 %s30, 1
        %s222 = smul.addr %s221, 8
        %s223 = scalar_lea.vmem [#allocation2], %s222
        %p224 = pneg %p43
        %p225 = pneg %p40
        %p226 = pneg %p64
        %p227 = pneg %p61
        %p228 = pneg %p85
        %p229 = pneg %p82
        %p230 = pneg %p106
        %p231 = pneg %p103
        %p232 = pneg %p127
        %p233 = pneg %p124
        %p234 = pneg %p153
        %p235 = pneg %p150
        %s236 = sand.u32 %s140, 1
        %s237 = scalar_lea.sflag [#allocation4], %s236
        %s238 = sand.u32 %s140, 1
        %s239 = smul.addr %s238, 8
        %s240 = scalar_lea.vmem [#allocation5], %s239
        %v241 = vld [vmem:[%s214] sm:$0xff]
        %v243 = vcombine.high %v241, %v241
        %vm245 = vcmask 1043456
        %v246 = vsel %vm245, %v241, 0.0
        %v247 = vsel %vm245, %v243, 0.0
        %v248 = vadd.f32 %v246, %v247
        %249 = vadd.xlane.f32.xlu0 %v248
        %v250 = vpop.xlane.xlu0 %249
        %v251 = vrcp.pop 256.0
        %v252 = vmul.f32 %v250, %v251
        %v253 = vld [vmem:[%s1] sm:$0xf]
        %v254 = vld [vmem:[%s2] sm:$0x1]
        %v256 = vlaneseq
        %v257 = vand.u32 %v256, 127
        %v258 = vlaneseq
        %v259 = vshrl.u32 %v258, 7
        %v260 = vsub.s32 %v257, %v259
        %v261 = vrot.slane %v252, %v260
        %vm262 = vcmask 31744
        %v263 = vsel %vm262, %v261, 0
        %v266 = vsel %vm245, %v253, 0
        %268 = vmatprep.subr.mxu0 0.0
        %269 = vmatpush1.msra.mxu0 0.0
        %270 = vmatprep.subr.mxu0 0.0
        %271 = vmatpush1.msra.mxu0 0.0
        %272 = vmatprep.subr.mxu0 0.0
        %273 = vmatpush1.msra.mxu0 0.0
        %274 = vmatprep.subr.mxu0 0.0
        %275 = vmatpush1.msra.mxu0 0.0
        %276 = vmatprep.subr.mxu0 0.0
        %277 = vmatpush1.msra.mxu0 0.0
        %278 = vmatprep.subr.mxu0 0.0
        %279 = vmatpush1.msra.mxu0 0.0
        %280 = vmatprep.subr.mxu0 0.0
        %281 = vmatpush1.msra.mxu0 0.0
        %282 = vmatprep.subr.mxu0 0.0
        %283 = vmatpush1.msra.mxu0 0.0
        %284 = vmatprep.subr.mxu0 0.0
        %285 = vmatpush1.msra.mxu0 0.0
        %286 = vmatprep.subr.mxu0 0.0
        %287 = vmatpush1.msra.mxu0 0.0
        %288 = vmatprep.subr.mxu0 0.0
        %289 = vmatpush1.msra.mxu0 0.0
        %290 = vmatprep.subr.mxu0 0.0
        %291 = vmatpush1.msra.mxu0 0.0
        %292 = vmatprep.subr.mxu0 0.0
        %293 = vmatpush1.msra.mxu0 0.0
        %294 = vmatprep.subr.mxu0 0.0
        %295 = vmatpush1.msra.mxu0 0.0
        %296 = vmatprep.subr.mxu0 0.0
        %297 = vmatpush1.msra.mxu0 0.0
        %298 = vmatprep.subr.mxu0 0.0
        %299 = vmatpush1.msra.mxu0 %v266
        %300 = vmatprep.subr.mxu0 0.0
        %301 = vmatpush2.msra.mxu0 0.0
        %302 = vmatprep.subr.mxu0 0.0
        %303 = vmatpush2.msra.mxu0 0.0
        %304 = vmatprep.subr.mxu0 0.0
        %305 = vmatpush2.msra.mxu0 0.0
        %306 = vmatprep.subr.mxu0 0.0
        %307 = vmatpush2.msra.mxu0 0.0
        %308 = vmatprep.subr.mxu0 0.0
        %309 = vmatpush2.msra.mxu0 0.0
        %310 = vmatprep.subr.mxu0 0.0
        %311 = vmatpush2.msra.mxu0 0.0
        %312 = vmatprep.subr.mxu0 0.0
        %313 = vmatpush2.msra.mxu0 0.0
        %314 = vmatprep.subr.mxu0 0.0
        %315 = vmatpush2.msra.mxu0 0.0
        %316 = vmatprep.subr.mxu0 0.0
        %317 = vmatpush2.msra.mxu0 0.0
        %318 = vmatprep.subr.mxu0 0.0
        %319 = vmatpush2.msra.mxu0 0.0
        %320 = vmatprep.subr.mxu0 0.0
        %321 = vmatpush2.msra.mxu0 0.0
        %322 = vmatprep.subr.mxu0 0.0
        %323 = vmatpush2.msra.mxu0 0.0
        %324 = vmatprep.subr.mxu0 0.0
        %325 = vmatpush2.msra.mxu0 0.0
        %326 = vmatprep.subr.mxu0 0.0
        %327 = vmatpush2.msra.mxu0 0.0
        %328 = vmatprep.subr.mxu0 0.0
        %329 = vmatpush2.msra.mxu0 0.0
        %330 = vmatprep.subr.mxu0 0.0
        %331 = vmatpush2.msra.mxu0 0.0
        %332 = vmatprep.mubr.f32.mxu0 0.0
        %333 = vmatmul.mubr.f32.gmra.mxu0 %v263
        %v334 = vpop.f32.mrf.mxu0
        %v335 = vadd.f32 %v254, %v334
        %v336 = vpop.f32.mrf.mxu0
        %337 = vdwg.mxu0
        %v338 = vxor.u32 %v335, 2147483648
        %v339 = vmul.f32 %v338, 1.442695
        %v340 = vpow.pop %v339
        %v341 = vadd.f32 %v340, 1.0
        %v342 = vrcp.pop %v341
        %v343 = vmul.f32 1.0, %v342
        %v344 = vmul.f32 %v335, %v343
        %v345 = vld [vmem:[%s3] sm:$0xff]
        %v346 = vld [vmem:[%s4] sm:$0x1]
        %vm347 = vcmask 64512
        %v349 = vsel %vm347, %v344, 0
        %351 = vmatprep.subr.mxu0 0.0
        %352 = vmatpush1.msra.mxu0 0.0
        %353 = vmatprep.subr.mxu0 0.0
        %354 = vmatpush1.msra.mxu0 0.0
        %355 = vmatprep.subr.mxu0 0.0
        %356 = vmatpush1.msra.mxu0 0.0
        %357 = vmatprep.subr.mxu0 0.0
        %358 = vmatpush1.msra.mxu0 0.0
        %359 = vmatprep.subr.mxu0 0.0
        %360 = vmatpush1.msra.mxu0 0.0
        %361 = vmatprep.subr.mxu0 0.0
        %362 = vmatpush1.msra.mxu0 0.0
        %363 = vmatprep.subr.mxu0 0.0
        %364 = vmatpush1.msra.mxu0 0.0
        %365 = vmatprep.subr.mxu0 0.0
        %366 = vmatpush1.msra.mxu0 0.0
        %367 = vmatprep.subr.mxu0 0.0
        %368 = vmatpush1.msra.mxu0 0.0
        %369 = vmatprep.subr.mxu0 0.0
        %370 = vmatpush1.msra.mxu0 0.0
        %371 = vmatprep.subr.mxu0 0.0
        %372 = vmatpush1.msra.mxu0 0.0
        %373 = vmatprep.subr.mxu0 0.0
        %374 = vmatpush1.msra.mxu0 0.0
        %375 = vmatprep.subr.mxu0 0.0
        %376 = vmatpush1.msra.mxu0 0.0
        %377 = vmatprep.subr.mxu0 0.0
        %378 = vmatpush1.msra.mxu0 0.0
        %379 = vmatprep.subr.mxu0 0.0
        %380 = vmatpush1.msra.mxu0 0.0
        %381 = vmatprep.subr.mxu0 0.0
        %382 = vmatpush1.msra.mxu0 %v345
        %383 = vmatprep.subr.mxu0 0.0
        %384 = vmatpush2.msra.mxu0 0.0
        %385 = vmatprep.subr.mxu0 0.0
        %386 = vmatpush2.msra.mxu0 0.0
        %387 = vmatprep.subr.mxu0 0.0
        %388 = vmatpush2.msra.mxu0 0.0
        %389 = vmatprep.subr.mxu0 0.0
        %390 = vmatpush2.msra.mxu0 0.0
        %391 = vmatprep.subr.mxu0 0.0
        %392 = vmatpush2.msra.mxu0 0.0
        %393 = vmatprep.subr.mxu0 0.0
        %394 = vmatpush2.msra.mxu0 0.0
        %395 = vmatprep.subr.mxu0 0.0
        %396 = vmatpush2.msra.mxu0 0.0
        %397 = vmatprep.subr.mxu0 0.0
        %398 = vmatpush2.msra.mxu0 0.0
        %399 = vmatprep.subr.mxu0 0.0
        %400 = vmatpush2.msra.mxu0 0.0
        %401 = vmatprep.subr.mxu0 0.0
        %402 = vmatpush2.msra.mxu0 0.0
        %403 = vmatprep.subr.mxu0 0.0
        %404 = vmatpush2.msra.mxu0 0.0
        %405 = vmatprep.subr.mxu0 0.0
        %406 = vmatpush2.msra.mxu0 0.0
        %407 = vmatprep.subr.mxu0 0.0
        %408 = vmatpush2.msra.mxu0 0.0
        %409 = vmatprep.subr.mxu0 0.0
        %410 = vmatpush2.msra.mxu0 0.0
        %411 = vmatprep.subr.mxu0 0.0
        %412 = vmatpush2.msra.mxu0 0.0
        %413 = vmatprep.subr.mxu0 0.0
        %414 = vmatpush2.msra.mxu0 0.0
        %415 = vmatprep.mubr.f32.mxu0 0.0
        %416 = vmatmul.mubr.f32.gmra.mxu0 %v349
        %v417 = vpop.f32.mrf.mxu0
        %v418 = vadd.f32 %v346, %v417
        %v419 = vpop.f32.mrf.mxu0
        %420 = vdwg.mxu0
        %v421 = vxor.u32 %v418, 2147483648
        %v422 = vmul.f32 %v421, 1.442695
        %v423 = vpow.pop %v422
        %v424 = vadd.f32 %v423, 1.0
        %v425 = vrcp.pop %v424
        %v426 = vmul.f32 1.0, %v425
        %v427 = vlaneseq
        %v428 = vshrl.u32 %v427, 7
        %v429 = vsub.s32 0, %v428
        %v430 = vrot.slane %v426, %v429
        %432 = vbcast.lane.b32.xlu0 %v430, 256
        %v433 = vpop.permute.xlu0 %432
        %v436 = vunpack.c.l.s4 839922192
        %v437 = vunpack.c.0.s8 %v436
        %v438 = vlaneseq
        %v439 = vshrl.u32 %v438, 7
        %v440 = vsub.s32 %v437, %v439
        %v441 = vrot.slane %v433, %v440
        %v443 = vmul.f32 %v241, %v441
        %444 = vst [vmem:[%s240] sm:$0xff] %v443
        %s445 = sand.u32 %s140, 1
        %s446 = scalar_lea.sflag [#allocation4], %s445
        %s447 = sand.u32 %s140, 1
        %s448 = smul.addr %s447, 8
        %s449 = scalar_lea.vmem [#allocation5], %s448
        // Predicated region
        $region45: #{tpu_custom_call.1} parent=39 // pred_check
          %p450 = pneg %p150
        $region46: #{tpu_custom_call.1} parent=39 // pred_check_branch
          %452 = sbr.rel (%p450) target = $region48
        $region47: #{tpu_custom_call.1} parent=39 // pred_region
          %s454 = ssub.s32 128, 128
          %455 = vsyncadd %s446, %s454
          %s456 = smul.addr %s22, 2
          %s457 = smul.addr %s456, 64
          %s458 = scalar_lea.hbm %s5, %s457
          %s460 = sshll.u32 %s449, 4
          %s461 = int_to_ptr.vmem [resolvable:$true] %s460
          %463 = dma.vmem_to_hbm [thread:$0]  %s461, 128, %s458, %s446
        $region48: #{tpu_custom_call.1} parent=39 // pred_fallthru
          _
      $region40: #{tpu_custom_call.1} parent=5 // pred_fallthru
        _
      %p464 = scmp.le.s32.totalorder 2, %s17
      // Predicated region
      $region49: #{tpu_custom_call.1} parent=5 // pred_check
        %p465 = pneg %p464
      $region50: #{tpu_custom_call.1} parent=5 // pred_check_branch
        %467 = sbr.rel (%p465) target = $region52
      $region51: #{tpu_custom_call.1} parent=5 // pred_region
        %s468 = ssub.s32 %s17, 2
        // Predicated region
        $region53: #{tpu_custom_call.1} parent=51 // pred_check
          %p469 = pneg %p156
        $region54: #{tpu_custom_call.1} parent=51 // pred_check_branch
          %471 = sbr.rel (%p469) target = $region56
        $region55: #{tpu_custom_call.1} parent=51 // pred_region
          %s472 = sand.u32 %s141, 1
          %s473 = scalar_lea.sflag [#allocation4], %s472
          %s474 = sand.u32 %s141, 1
          %s475 = smul.addr %s474, 8
          %s476 = scalar_lea.vmem [#allocation5], %s475
          %477 = dma.done %s473, 128
        $region56: #{tpu_custom_call.1} parent=51 // pred_fallthru
          _
      $region52: #{tpu_custom_call.1} parent=5 // pred_fallthru
        _
    $region6: #{tpu_custom_call.1} parent=1 // loop_footer
      %s21 = sadd.s32 1, %s17
    $region7: #{tpu_custom_call.1} parent=1 // loop_footer_branch
      %16 = sbr.rel target = $region3
    $region8: #{tpu_custom_call.1} parent=1 // loop_exit
      _
    %478 = vsyncpa [#allocation3], 1
    %s479 = scalar_lea.sflag [#allocation3], 1
    %480 = vsyncpa %s479, 1
    %481 = vsyncpa [#allocation4], 1
    %s482 = scalar_lea.sflag [#allocation4], 1
    %483 = vsyncpa %s482, 1

</llo_original>
